<compile_context>
chip_gen: v5e
topology: v5e:2x2
jax: 0.10.0
libtpu: 0.0.40
codegen_flags: <defaults>
</compile_context>

<pallas_src>
import jax
import jax.numpy as jnp
from jax.experimental import pallas as pl
from jax.experimental.pallas import tpu as pltpu


def _round_up(x, m):
    return ((x + m - 1) // m) * m


def _sublane_for(dtype):
    nbytes = jnp.dtype(dtype).itemsize
    if nbytes >= 4:
        return 8
    if nbytes == 2:
        return 16
    return 32


def _ffn_partial(x_ref, w1_ref, b1_ref, w2_ref):
    """(tm, E) f32 partial of the second matmul for one hidden block."""
    # Linear 1 on native-dtype operands, f32 accumulation: (tm, E) @ (E, th).
    h = jnp.dot(x_ref[...], w1_ref[...], preferred_element_type=jnp.float32)
    h = h + b1_ref[...].astype(jnp.float32)
    # GELU (tanh approximation, matching the PyTorch GELU module), in f32.
    # h + 0.044715*h^3 == h * (1 + 0.044715*h^2): one fewer VPU multiply.
    c = jnp.float32(0.7978845608028654)  # sqrt(2/pi)
    g = 0.5 * h * (1.0 + jnp.tanh(c * (h * (1.0 + 0.044715 * (h * h)))))
    # Linear 2 partial: (tm, th) @ (th, E), accumulated across hidden blocks.
    return jnp.dot(g.astype(w2_ref.dtype), w2_ref[...],
                   preferred_element_type=jnp.float32)


def _ffn_kernel_f32_out(x_ref, w1_ref, b1_ref, w2_ref, b2_ref, o_ref):
    """f32 output: accumulate straight into o_ref (resident across the h axis)."""
    h_idx = pl.program_id(1)

    @pl.when(h_idx == 0)
    def _():
        o_ref[...] = jnp.broadcast_to(b2_ref[...].astype(o_ref.dtype), o_ref.shape)

    o_ref[...] += _ffn_partial(x_ref, w1_ref, b1_ref, w2_ref)


def _ffn_kernel_scratch(x_ref, w1_ref, b1_ref, w2_ref, b2_ref, o_ref, acc_ref):
    """Non-f32 output: accumulate in an f32 VMEM scratch, cast on finalize."""
    h_idx = pl.program_id(1)

    @pl.when(h_idx == 0)
    def _():
        acc_ref[...] = jnp.zeros_like(acc_ref)

    acc_ref[...] += _ffn_partial(x_ref, w1_ref, b1_ref, w2_ref)

    @pl.when(h_idx == pl.num_programs(1) - 1)
    def _():
        o_ref[...] = (acc_ref[...] + b2_ref[...].astype(jnp.float32)).astype(o_ref.dtype)


@jax.jit
def feedforward_pallas(x, w1, b1, w2, b2):
    """x: (..., E); w1: (E, H); b1: (H,); w2: (H, E); b2: (E,)."""
    orig_shape = x.shape
    E = orig_shape[-1]
    H = w1.shape[1]
    x2d = x.reshape(-1, E)
    M = x2d.shape[0]

    out_dtype = x.dtype
    f32_out = jnp.dtype(out_dtype) == jnp.dtype(jnp.float32)

    x_b = jnp.dtype(x.dtype).itemsize
    o_b = jnp.dtype(out_dtype).itemsize
    w1_b = jnp.dtype(w1.dtype).itemsize
    w2_b = jnp.dtype(w2.dtype).itemsize
    b1_b = jnp.dtype(b1.dtype).itemsize
    b2_b = jnp.dtype(b2.dtype).itemsize

    sublane = _sublane_for(x.dtype)

    # --- VMEM budget, per generation (v5e/v6e: 128 MiB, v7x: 64 MiB/TC). ---
    try:
        vmem_cap = int(pltpu.get_tpu_info().vmem_capacity_bytes)
    except Exception:  # pragma: no cover - e.g. interpret mode
        vmem_cap = 64 * 1024 * 1024
    budget = min(int(vmem_cap * 0.70), 100 * 1024 * 1024)

    def footprint(tm_, th_):
        f = 2 * tm_ * E * x_b                 # x row tile (double-buffered)
        f += 2 * tm_ * E * o_b                # output tile (double-buffered)
        if not f32_out:
            f += tm_ * E * 4                  # f32 accumulator scratch
        f += 2 * E * th_ * w1_b               # W1 column block (double-buffered)
        f += 2 * th_ * E * w2_b               # W2 row block (double-buffered)
        f += 2 * th_ * b1_b + 2 * E * b2_b    # biases
        return f

    m_cap = _round_up(M, sublane)
    h_cap = _round_up(H, 128)

    tm_cands = sorted({min(c, m_cap) for c in (1024, 512, 256, 128, 64, 32, 16, 8)},
                      reverse=True)
    th_cands = sorted({min(c, h_cap) for c in (2048, 1024, 512, 256, 128)},
                      reverse=True)

    tm = th = None
    # Pass A: weight-resident path. th == padded H collapses the hidden grid axis
    # to 1, so W1/W2 are DMA'd exactly once for the whole kernel (constant index
    # map), instead of being re-streamed per row tile.
    for tm_try in tm_cands:
        if tm_try < min(256, tm_cands[0]):
            break
        if footprint(tm_try, h_cap) <= budget:
            tm, th = tm_try, h_cap
            break
    # Pass B: stream hidden blocks. Maximize tm first (weight re-stream arithmetic
    # intensity ~ tm FLOP/byte), then take the largest hidden block that fits.
    if tm is None:
        for tm_try in tm_cands:
            for th_try in th_cands:
                if footprint(tm_try, th_try) <= budget:
                    tm, th = tm_try, th_try
                    break
            if tm is not None:
                break
    if tm is None:  # pathological E; fall back to the smallest tiles.
        tm, th = tm_cands[-1], th_cands[-1]

    # Megacore (v7x: 2 TensorCores): make sure the "parallel" row axis has >= 2
    # blocks whenever there is enough work to split.
    if _round_up(M, tm) // tm == 1 and m_cap > sublane:
        tm = min(tm, _round_up((M + 1) // 2, sublane))

    # Pad M up to a multiple of the row tile (padded rows are dropped at the end).
    m_pad = _round_up(M, tm)
    if m_pad != M:
        x2d = jnp.pad(x2d, ((0, m_pad - M), (0, 0)))

    # Pad H up to a multiple of the hidden block (zero hidden units contribute 0:
    # GELU(0)=0 against zero W2 rows).
    h_pad = _round_up(H, th)
    if h_pad != H:
        w1 = jnp.pad(w1, ((0, 0), (0, h_pad - H)))
        b1 = jnp.pad(b1, ((0, h_pad - H),))
        w2 = jnp.pad(w2, ((0, h_pad - H), (0, 0)))

    b1r = b1.reshape(1, h_pad)
    b2r = b2.reshape(1, E)

    grid_i = m_pad // tm
    grid_h = h_pad // th
    grid = (grid_i, grid_h)

    # Weights stream once total when the h axis is collapsed, else once per row tile.
    weight_passes = 1 if grid_h == 1 else grid_i
    cost = pl.CostEstimate(
        flops=4 * m_pad * E * h_pad,
        transcendentals=m_pad * h_pad,
        bytes_accessed=(m_pad * E * (x_b + o_b)
                        + weight_passes * (E * h_pad * w1_b + h_pad * E * w2_b)
                        + h_pad * b1_b + E * b2_b),
    )

    in_specs = [
        pl.BlockSpec((tm, E), lambda i, h: (i, 0)),   # x row tile
        pl.BlockSpec((E, th), lambda i, h: (0, h)),   # W1 column block
        pl.BlockSpec((1, th), lambda i, h: (0, h)),   # b1 block
        pl.BlockSpec((th, E), lambda i, h: (h, 0)),   # W2 row block
        pl.BlockSpec((1, E), lambda i, h: (0, 0)),    # b2 (constant)
    ]
    out_spec = pl.BlockSpec((tm, E), lambda i, h: (i, 0))

    kernel = _ffn_kernel_f32_out if f32_out else _ffn_kernel_scratch
    scratch = [] if f32_out else [pltpu.VMEM((tm, E), jnp.float32)]

    vmem_limit = min(int(vmem_cap * 0.85), budget + (16 << 20))

    out2d = pl.pallas_call(
        kernel,
        out_shape=jax.ShapeDtypeStruct((m_pad, E), out_dtype),
        grid_spec=pltpu.PrefetchScalarGridSpec(
            num_scalar_prefetch=0,
            grid=grid,
            in_specs=in_specs,
            out_specs=out_spec,
            scratch_shapes=scratch,
        ),
        compiler_params=pltpu.CompilerParams(
            dimension_semantics=("parallel", "arbitrary"),
            vmem_limit_bytes=vmem_limit,
        ),
        cost_estimate=cost,
    )(x2d, w1, b1r, w2, b2r)

    if m_pad != M:
        out2d = out2d[:M]
    return out2d.reshape(orig_shape)

    # TODO(synk): for very small E (<128, like the unit test) the output store is a
    # masked partial-lane store; real models with E a multiple of 128 hit the
    # lane-dense fast path automatically. On v5e, consider casting f32 operands to
    # bf16 outside this wrapper for MXU throughput (left opt-in for exact semantics).


def _gelu_ref(x):
    return 0.5 * x * (1.0 + jnp.tanh(jnp.sqrt(2.0 / jnp.pi) * (x + 0.044715 * x ** 3)))


def feedforward_ref(x, w1, b1, w2, b2):
    h = _gelu_ref(x @ w1 + b1)
    return h @ w2 + b2


if __name__ == "__main__":
    # cfg = {'emb_dim': 32}; input (batch=2, seq=8, emb=32)
    emb_dim = 32
    hidden = 4 * emb_dim
    batch, seq = 2, 8

    key = jax.random.PRNGKey(0)
    kx, k1, k2, k3, k4 = jax.random.split(key, 5)

    x = jax.random.normal(kx, (batch, seq, emb_dim), dtype=jnp.float32)

    # Deterministic param init (PyTorch-Linear-style uniform bounds).
    bound1 = 1.0 / jnp.sqrt(emb_dim)
    bound2 = 1.0 / jnp.sqrt(hidden)
    w1 = jax.random.uniform(k1, (emb_dim, hidden), jnp.float32, -bound1, bound1)
    b1 = jax.random.uniform(k2, (hidden,), jnp.float32, -bound1, bound1)
    w2 = jax.random.uniform(k3, (hidden, emb_dim), jnp.float32, -bound2, bound2)
    b2 = jax.random.uniform(k4, (emb_dim,), jnp.float32, -bound2, bound2)

    out = feedforward_pallas(x, w1, b1, w2, b2)
    out = jax.block_until_ready(out)

    ref = feedforward_ref(x, w1, b1, w2, b2)
    assert out.shape == x.shape
    assert jnp.allclose(out, ref, atol=1e-4, rtol=1e-4), "mismatch vs reference"

    print("KERNEL_OK")
</pallas_src>

<mosaic_0001>
module attributes {stable_mosaic.version = 11 : i64} {
  func.func @_ffn_kernel_f32_out(%arg0: i32, %arg1: i32, %arg2: memref<8x32xf32, #tpu.memory_space<vmem>>, %arg3: memref<32x128xf32, #tpu.memory_space<vmem>>, %arg4: memref<1x128xf32, #tpu.memory_space<vmem>>, %arg5: memref<128x32xf32, #tpu.memory_space<vmem>>, %arg6: memref<1x32xf32, #tpu.memory_space<vmem>>, %arg7: memref<8x32xf32, #tpu.memory_space<vmem>>) attributes {dimension_semantics = [#tpu.dimension_semantics<parallel>, #tpu.dimension_semantics<arbitrary>], iteration_bounds = array<i64: 2, 1>, scalar_prefetch = 0 : i64, scratch_operands = 0 : i64, tpu.core_type = #tpu.core_type<tc>, window_params = [{transform_indices = @transform_0, window_bounds = array<i64: 8, 32>}, {transform_indices = @transform_1, window_bounds = array<i64: 32, 128>}, {transform_indices = @transform_2, window_bounds = array<i64: 1, 128>}, {transform_indices = @transform_3, window_bounds = array<i64: 128, 32>}, {pipeline_mode = #tpu.pipeline_mode<synchronous>, transform_indices = @transform_4, window_bounds = array<i64: 1, 32>}, {transform_indices = @transform_5, window_bounds = array<i64: 8, 32>}]} {
    %c0_i32 = arith.constant 0 : i32
    %0 = arith.cmpi eq, %arg1, %c0_i32 : i32
    %1 = arith.extui %0 : i1 to i32
    %c0_i32_0 = arith.constant 0 : i32
    %2 = arith.cmpi ne, %1, %c0_i32_0 : i32
    scf.if %2 {
      %c0_18 = arith.constant 0 : index
      %c0_19 = arith.constant 0 : index
      %28 = vector.load %arg6[%c0_18, %c0_19] : memref<1x32xf32, #tpu.memory_space<vmem>>, vector<1x32xf32>
      %29 = vector.shape_cast %28 : vector<1x32xf32> to vector<1x32xf32>
      %30 = vector.broadcast %29 : vector<1x32xf32> to vector<8x32xf32>
      %c0_20 = arith.constant 0 : index
      %c0_21 = arith.constant 0 : index
      %31 = vector.load %arg7[%c0_20, %c0_21] : memref<8x32xf32, #tpu.memory_space<vmem>>, vector<8x32xf32>
      tpu.vector_store %arg7[%c0_20, %c0_21], %30 {strides = array<i32>} : memref<8x32xf32, #tpu.memory_space<vmem>>, vector<8x32xf32>,
    } else {
    }
    %c0 = arith.constant 0 : index
    %c0_1 = arith.constant 0 : index
    %3 = vector.load %arg7[%c0, %c0_1] : memref<8x32xf32, #tpu.memory_space<vmem>>, vector<8x32xf32>
    %c0_2 = arith.constant 0 : index
    %c0_3 = arith.constant 0 : index
    %4 = vector.load %arg2[%c0_2, %c0_3] : memref<8x32xf32, #tpu.memory_space<vmem>>, vector<8x32xf32>
    %c0_4 = arith.constant 0 : index
    %c0_5 = arith.constant 0 : index
    %5 = vector.load %arg3[%c0_4, %c0_5] : memref<32x128xf32, #tpu.memory_space<vmem>>, vector<32x128xf32>
    %cst = arith.constant dense<0.000000e+00> : vector<8x128xf32>
    %6 = tpu.matmul %4, %5, %cst {dimension_numbers = #tpu.dot_dimension_numbers<[1], [0], [0], [1], [0, 0, 1, 1], [], []>} : vector<8x32xf32>, vector<32x128xf32>, vector<8x128xf32> -> vector<8x128xf32>
    %c0_6 = arith.constant 0 : index
    %c0_7 = arith.constant 0 : index
    %7 = vector.load %arg4[%c0_6, %c0_7] : memref<1x128xf32, #tpu.memory_space<vmem>>, vector<1x128xf32>
    %8 = vector.broadcast %7 : vector<1x128xf32> to vector<8x128xf32>
    %9 = arith.addf %6, %8 : vector<8x128xf32>
    %cst_8 = arith.constant 5.000000e-01 : f32
    %10 = vector.broadcast %cst_8 : f32 to vector<8x128xf32>
    %11 = arith.mulf %10, %9 : vector<8x128xf32>
    %12 = arith.mulf %9, %9 : vector<8x128xf32>
    %cst_9 = arith.constant 4.471500e-02 : f32
    %13 = vector.broadcast %cst_9 : f32 to vector<8x128xf32>
    %14 = arith.mulf %13, %12 : vector<8x128xf32>
    %cst_10 = arith.constant 1.000000e+00 : f32
    %15 = vector.broadcast %cst_10 : f32 to vector<8x128xf32>
    %16 = arith.addf %15, %14 : vector<8x128xf32>
    %17 = arith.mulf %9, %16 : vector<8x128xf32>
    %cst_11 = arith.constant 0.797884583 : f32
    %18 = vector.broadcast %cst_11 : f32 to vector<8x128xf32>
    %19 = arith.mulf %18, %17 : vector<8x128xf32>
    %20 = math.tanh %19 : vector<8x128xf32>
    %cst_12 = arith.constant 1.000000e+00 : f32
    %21 = vector.broadcast %cst_12 : f32 to vector<8x128xf32>
    %22 = arith.addf %21, %20 : vector<8x128xf32>
    %23 = arith.mulf %11, %22 : vector<8x128xf32>
    %c0_13 = arith.constant 0 : index
    %c0_14 = arith.constant 0 : index
    %24 = vector.load %arg5[%c0_13, %c0_14] : memref<128x32xf32, #tpu.memory_space<vmem>>, vector<128x32xf32>
    %cst_15 = arith.constant dense<0.000000e+00> : vector<8x32xf32>
    %25 = tpu.matmul %23, %24, %cst_15 {dimension_numbers = #tpu.dot_dimension_numbers<[1], [0], [0], [1], [0, 0, 1, 1], [], []>} : vector<8x128xf32>, vector<128x32xf32>, vector<8x32xf32> -> vector<8x32xf32>
    %26 = arith.addf %3, %25 : vector<8x32xf32>
    %c0_16 = arith.constant 0 : index
    %c0_17 = arith.constant 0 : index
    %27 = vector.load %arg7[%c0_16, %c0_17] : memref<8x32xf32, #tpu.memory_space<vmem>>, vector<8x32xf32>
    tpu.vector_store %arg7[%c0_16, %c0_17], %26 {strides = array<i32>} : memref<8x32xf32, #tpu.memory_space<vmem>>, vector<8x32xf32>,
    return
  }
  func.func @transform_0(%arg0: i32, %arg1: i32) -> (i32, i32) {
    %c0_i32 = arith.constant 0 : i32
    %c0_i32_0 = arith.constant 0 : i32
    return %arg0, %c0_i32 : i32, i32
  }
  func.func @transform_1(%arg0: i32, %arg1: i32) -> (i32, i32) {
    %c0_i32 = arith.constant 0 : i32
    %c0_i32_0 = arith.constant 0 : i32
    return %c0_i32, %arg1 : i32, i32
  }
  func.func @transform_2(%arg0: i32, %arg1: i32) -> (i32, i32) {
    %c0_i32 = arith.constant 0 : i32
    %c0_i32_0 = arith.constant 0 : i32
    return %c0_i32, %arg1 : i32, i32
  }
  func.func @transform_3(%arg0: i32, %arg1: i32) -> (i32, i32) {
    %c0_i32 = arith.constant 0 : i32
    %c0_i32_0 = arith.constant 0 : i32
    return %arg1, %c0_i32 : i32, i32
  }
  func.func @transform_4(%arg0: i32, %arg1: i32) -> (i32, i32) {
    %c0_i32 = arith.constant 0 : i32
    %c0_i32_0 = arith.constant 0 : i32
    %c0_i32_1 = arith.constant 0 : i32
    return %c0_i32, %c0_i32_0 : i32, i32
  }
  func.func @transform_5(%arg0: i32, %arg1: i32) -> (i32, i32) {
    %c0_i32 = arith.constant 0 : i32
    %c0_i32_0 = arith.constant 0 : i32
    return %arg0, %c0_i32 : i32, i32
  }
}

</mosaic_0001>

<llo_original>
// kernel: feedforward_pallas.1
$region0: #{feedforward_pallas.1}
  #allocation0 [shape = 'u32[]', space=smem, size = 0x4, offset = 0x4, fixed_abs, tag = 'smem constant byte address 0x4 - core index']
  #allocation1 [shape = 'u32[72,128]{1,0:T(1,128)}', space=vmem, size = 0x9000, scoped, tag = 'internal scratch']
  %s0 = inlined_call_operand.vmem [shape: f32[16,32], index: 0, kind: input, shape index: {}]
  %s1 = inlined_call_operand.vmem [shape: f32[32,128], index: 1, kind: input, shape index: {}]
  %s2 = inlined_call_operand.vmem [shape: f32[1,128], index: 2, kind: input, shape index: {}]
  %s3 = inlined_call_operand.vmem [shape: f32[128,32], index: 3, kind: input, shape index: {}]
  %s4 = inlined_call_operand.vmem [shape: f32[1,32], index: 4, kind: input, shape index: {}]
  %s5 = inlined_call_operand.hbm [shape: f32[16,32], index: 5, kind: output, shape index: {}]
  %s6 = sld [smem:[#allocation0]]
  $region57: #{feedforward_pallas.1} parent=0
    _
  %s8 = ssub.s32 1, %s6
  %s9 = scalar_select 0, %s8, %s6
  $region1: #{feedforward_pallas.1} parent=0
    #allocation2 [shape = 'u8[8192]{0}', space=vmem, size = 0x2000, scoped, tag = 'output window, operand 0']
    #allocation3 [shape = 's32[2]{0}', space=sflag, size = 0x8, scoped, tag = 'scoped memory for feedforward_pallas.1']
    %10 = vsyncpa [#allocation3], 0
    %s11 = scalar_lea.sflag [#allocation3], 1
    %12 = vsyncpa %s11, 0
    loop: start=0, step=1, limit=4
    $region2: #{feedforward_pallas.1} parent=1 // loop_pre_header
      _
    $region3: #{feedforward_pallas.1} parent=1 // loop_header
      %s14 = sphi 0, %s18
      %p15 = scmp.ge.s32.totalorder %s14, 4
      %s21 = sphi 0, %s33
      %s22 = sphi 0, %s29
      %s23 = sphi 0, %s21
      %s24 = sphi 0, %s22
      %s25 = sphi 0, %s23
      %s26 = sphi 0, %s24
      %s36 = sphi 0, %s38
      %s39 = sphi 0, %s36
      %s40 = sphi 0, %s39
      %s56 = sphi 0, %s40
      %s62 = sphi 0, %s64
      %s65 = sphi 0, %s62
      %s66 = sphi 0, %s65
      %s82 = sphi 0, %s66
      %s88 = sphi 0, %s90
      %s91 = sphi 0, %s88
      %s92 = sphi 0, %s91
      %s108 = sphi 0, %s92
      %s114 = sphi 0, %s116
      %s117 = sphi 0, %s114
      %s118 = sphi 0, %s117
      %s134 = sphi 0, %s118
      %s138 = sphi 0, %s138
      %s140 = sphi 0, %s138
      %s141 = sphi 0, %s140
      %s155 = sphi 0, %s141
      %s161 = sphi 0, %s163
      %s164 = sphi 0, %s161
      %s165 = sphi 0, %s164
      %s181 = sphi 0, %s165
    $region4: #{feedforward_pallas.1} parent=1 // loop_header_branch
      %17 = sbr.rel (%p15) target = $region8
    $region5: #{feedforward_pallas.1} parent=1 // loop_body
      %s19 = ssub.s32 %s14, 1
      %s20 = ssub.s32 %s14, 2
      %s27 = sadd.s32 1, %s22
      %p28 = scmp.ge.s32.totalorder %s27, 1
      %s29 = scalar_select %p28, 0, %s27
      %s30 = sadd.s32 1, %s21
      %s31 = scalar_select %p28, %s30, %s21
      %p32 = scmp.ge.s32.totalorder %s31, 2
      %s33 = scalar_select %p32, 0, %s31
      %s34 = ssub.s32 %s21, %s33
      %p35 = scmp.eq.s32.totalorder %s34, 0
      %s37 = sadd.s32 %s36, 1
      %s38 = scalar_select %p35, %s36, %s37
      %p41 = pneg %p35
      %p42 = scmp.eq.s32.totalorder %s14, 1
      %p43 = por %p41, %p42
      %p44 = scmp.ne.s32.totalorder %s36, %s39
      %p45 = scmp.eq.s32.totalorder %s14, 0
      %p46 = por %p44, %p45
      %p47 = scmp.ne.s32.totalorder %s36, %s39
      %p48 = scmp.eq.s32.totalorder %s19, 1
      %p49 = por %p47, %p48
      %p50 = scmp.ne.s32.totalorder %s39, %s40
      %p51 = scmp.eq.s32.totalorder %s19, 0
      %p52 = por %p50, %p51
      %p53 = scmp.ne.s32.totalorder %s39, %s40
      %p54 = scmp.eq.s32.totalorder %s20, 1
      %p55 = por %p53, %p54
      %p57 = scmp.ne.s32.totalorder %s40, %s56
      %p58 = scmp.eq.s32.totalorder %s20, 0
      %p59 = por %p57, %p58
      %s60 = ssub.s32 %s22, %s29
      %p61 = scmp.eq.s32.totalorder %s60, 0
      %s63 = sadd.s32 %s62, 1
      %s64 = scalar_select %p61, %s62, %s63
      %p67 = pneg %p61
      %p68 = scmp.eq.s32.totalorder %s14, 1
      %p69 = por %p67, %p68
      %p70 = scmp.ne.s32.totalorder %s62, %s65
      %p71 = scmp.eq.s32.totalorder %s14, 0
      %p72 = por %p70, %p71
      %p73 = scmp.ne.s32.totalorder %s62, %s65
      %p74 = scmp.eq.s32.totalorder %s19, 1
      %p75 = por %p73, %p74
      %p76 = scmp.ne.s32.totalorder %s65, %s66
      %p77 = scmp.eq.s32.totalorder %s19, 0
      %p78 = por %p76, %p77
      %p79 = scmp.ne.s32.totalorder %s65, %s66
      %p80 = scmp.eq.s32.totalorder %s20, 1
      %p81 = por %p79, %p80
      %p83 = scmp.ne.s32.totalorder %s66, %s82
      %p84 = scmp.eq.s32.totalorder %s20, 0
      %p85 = por %p83, %p84
      %s86 = ssub.s32 %s22, %s29
      %p87 = scmp.eq.s32.totalorder %s86, 0
      %s89 = sadd.s32 %s88, 1
      %s90 = scalar_select %p87, %s88, %s89
      %p93 = pneg %p87
      %p94 = scmp.eq.s32.totalorder %s14, 1
      %p95 = por %p93, %p94
      %p96 = scmp.ne.s32.totalorder %s88, %s91
      %p97 = scmp.eq.s32.totalorder %s14, 0
      %p98 = por %p96, %p97
      %p99 = scmp.ne.s32.totalorder %s88, %s91
      %p100 = scmp.eq.s32.totalorder %s19, 1
      %p101 = por %p99, %p100
      %p102 = scmp.ne.s32.totalorder %s91, %s92
      %p103 = scmp.eq.s32.totalorder %s19, 0
      %p104 = por %p102, %p103
      %p105 = scmp.ne.s32.totalorder %s91, %s92
      %p106 = scmp.eq.s32.totalorder %s20, 1
      %p107 = por %p105, %p106
      %p109 = scmp.ne.s32.totalorder %s92, %s108
      %p110 = scmp.eq.s32.totalorder %s20, 0
      %p111 = por %p109, %p110
      %s112 = ssub.s32 %s22, %s29
      %p113 = scmp.eq.s32.totalorder %s112, 0
      %s115 = sadd.s32 %s114, 1
      %s116 = scalar_select %p113, %s114, %s115
      %p119 = pneg %p113
      %p120 = scmp.eq.s32.totalorder %s14, 1
      %p121 = por %p119, %p120
      %p122 = scmp.ne.s32.totalorder %s114, %s117
      %p123 = scmp.eq.s32.totalorder %s14, 0
      %p124 = por %p122, %p123
      %p125 = scmp.ne.s32.totalorder %s114, %s117
      %p126 = scmp.eq.s32.totalorder %s19, 1
      %p127 = por %p125, %p126
      %p128 = scmp.ne.s32.totalorder %s117, %s118
      %p129 = scmp.eq.s32.totalorder %s19, 0
      %p130 = por %p128, %p129
      %p131 = scmp.ne.s32.totalorder %s117, %s118
      %p132 = scmp.eq.s32.totalorder %s20, 1
      %p133 = por %p131, %p132
      %p135 = scmp.ne.s32.totalorder %s118, %s134
      %p136 = scmp.eq.s32.totalorder %s20, 0
      %p137 = por %p135, %p136
      %s139 = sadd.s32 %s138, 1
      %p142 = scmp.eq.s32.totalorder %s14, 1
      %p143 = scmp.ne.s32.totalorder %s138, %s140
      %p144 = scmp.eq.s32.totalorder %s14, 0
      %p145 = por %p143, %p144
      %p146 = scmp.ne.s32.totalorder %s138, %s140
      %p147 = scmp.eq.s32.totalorder %s19, 1
      %p148 = por %p146, %p147
      %p149 = scmp.ne.s32.totalorder %s140, %s141
      %p150 = scmp.eq.s32.totalorder %s19, 0
      %p151 = por %p149, %p150
      %p152 = scmp.ne.s32.totalorder %s140, %s141
      %p153 = scmp.eq.s32.totalorder %s20, 1
      %p154 = por %p152, %p153
      %p156 = scmp.ne.s32.totalorder %s141, %s155
      %p157 = scmp.eq.s32.totalorder %s20, 0
      %p158 = por %p156, %p157
      %s159 = ssub.s32 %s21, %s33
      %p160 = scmp.eq.s32.totalorder %s159, 0
      %s162 = sadd.s32 %s161, 1
      %s163 = scalar_select %p160, %s161, %s162
      %p166 = pneg %p160
      %p167 = scmp.eq.s32.totalorder %s14, 1
      %p168 = por %p166, %p167
      %p169 = scmp.ne.s32.totalorder %s161, %s164
      %p170 = scmp.eq.s32.totalorder %s14, 0
      %p171 = por %p169, %p170
      %p172 = scmp.ne.s32.totalorder %s161, %s164
      %p173 = scmp.eq.s32.totalorder %s19, 1
      %p174 = por %p172, %p173
      %p175 = scmp.ne.s32.totalorder %s164, %s165
      %p176 = scmp.eq.s32.totalorder %s19, 0
      %p177 = por %p175, %p176
      %p178 = scmp.ne.s32.totalorder %s164, %s165
      %p179 = scmp.eq.s32.totalorder %s20, 1
      %p180 = por %p178, %p179
      %p182 = scmp.ne.s32.totalorder %s165, %s181
      %p183 = scmp.eq.s32.totalorder %s20, 0
      %p184 = por %p182, %p183
      %p185 = scmp.le.s32.totalorder 1, %s14
      %p186 = scmp.lt.s32.totalorder %s14, 3
      %p187 = pnand %p185, %p186
      %p188 = pneg %p187
      // Predicated region
      $region9: #{feedforward_pallas.1} parent=5 // pred_check
        _
      $region10: #{feedforward_pallas.1} parent=5 // pred_check_branch
        %190 = sbr.rel (%p187) target = $region12
      $region11: #{feedforward_pallas.1} parent=5 // pred_region
        %s191 = ssub.s32 %s14, 1
        // Predicated region
        $region13: #{feedforward_pallas.1} parent=11 // pred_check
          %p192 = pneg %p78
        $region14: #{feedforward_pallas.1} parent=11 // pred_check_branch
          %194 = sbr.rel (%p192) target = $region16
        $region15: #{feedforward_pallas.1} parent=11 // pred_region
          %p195 = scmp.lt.s32.totalorder %s24, 0
          %s196 = scalar_select %p195, %s24, 0
          %s197 = smul.addr %s196, 8
          %s198 = scalar_lea.vmem %s1, %s197
        $region16: #{feedforward_pallas.1} parent=11 // pred_fallthru
          _
        // Predicated region
        $region17: #{feedforward_pallas.1} parent=11 // pred_check
          %p199 = pneg %p104
        $region18: #{feedforward_pallas.1} parent=11 // pred_check_branch
          %201 = sbr.rel (%p199) target = $region20
        $region19: #{feedforward_pallas.1} parent=11 // pred_region
          %p202 = scmp.lt.s32.totalorder %s24, 0
          %s203 = scalar_select %p202, %s24, 0
          %s204 = scalar_lea.vmem %s2, %s203
        $region20: #{feedforward_pallas.1} parent=11 // pred_fallthru
          _
        // Predicated region
        $region21: #{feedforward_pallas.1} parent=11 // pred_check
          %p205 = pneg %p130
        $region22: #{feedforward_pallas.1} parent=11 // pred_check_branch
          %207 = sbr.rel (%p205) target = $region24
        $region23: #{feedforward_pallas.1} parent=11 // pred_region
          %s208 = smul.u32 16, %s24
          %p209 = scmp.lt.s32.totalorder %s208, 15
          %s210 = scalar_select %p209, %s208, 15
          %s211 = smul.addr %s210, 8
          %s212 = scalar_lea.vmem %s3, %s211
          %s213 = smul.u32 16, %s24
        $region24: #{feedforward_pallas.1} parent=11 // pred_fallthru
          _
        // Predicated region
        $region25: #{feedforward_pallas.1} parent=11 // pred_check
          %p214 = pneg %p151
        $region26: #{feedforward_pallas.1} parent=11 // pred_check_branch
          %216 = sbr.rel (%p214) target = $region28
        $region27: #{feedforward_pallas.1} parent=11 // pred_region
          _
        $region28: #{feedforward_pallas.1} parent=11 // pred_fallthru
          _
      $region12: #{feedforward_pallas.1} parent=5 // pred_fallthru
        _
      %p217 = scmp.lt.s32.totalorder %s14, 2
      // Predicated region
      $region29: #{feedforward_pallas.1} parent=5 // pred_check
        %p218 = pneg %p217
      $region30: #{feedforward_pallas.1} parent=5 // pred_check_branch
        %220 = sbr.rel (%p218) target = $region32
      $region31: #{feedforward_pallas.1} parent=5 // pred_region
        // Predicated region
        $region33: #{feedforward_pallas.1} parent=31 // pred_check
          %p221 = pneg %p46
        $region34: #{feedforward_pallas.1} parent=31 // pred_check_branch
          %223 = sbr.rel (%p221) target = $region36
        $region35: #{feedforward_pallas.1} parent=31 // pred_region
          %p224 = scmp.lt.s32.totalorder %s21, 1
          %s225 = scalar_select %p224, %s21, 1
          %s226 = smul.addr %s225, 8
          %s227 = scalar_lea.vmem %s0, %s226
        $region36: #{feedforward_pallas.1} parent=31 // pred_fallthru
          _
      $region32: #{feedforward_pallas.1} parent=5 // pred_fallthru
        _
      %p228 = scmp.le.s32.totalorder 1, %s14
      %p229 = scmp.lt.s32.totalorder %s14, 3
      %p230 = pnand %p228, %p229
      %p231 = pneg %p230
      // Predicated region
      $region37: #{feedforward_pallas.1} parent=5 // pred_check
        _
      $region38: #{feedforward_pallas.1} parent=5 // pred_check_branch
        %233 = sbr.rel (%p230) target = $region40
      $region39: #{feedforward_pallas.1} parent=5 // pred_region
        %s234 = ssub.s32 %s14, 1
        %p235 = scmp.lt.s32.totalorder %s23, 1
        %s236 = scalar_select %p235, %s23, 1
        %s237 = smul.addr %s236, 8
        %s238 = scalar_lea.vmem %s0, %s237
        %p239 = pneg %p52
        %p240 = pneg %p49
        %p241 = scmp.lt.s32.totalorder %s24, 0
        %s242 = scalar_select %p241, %s24, 0
        %s243 = smul.addr %s242, 8
        %s244 = scalar_lea.vmem %s1, %s243
        %p245 = pneg %p78
        %p246 = pneg %p75
        %p247 = scmp.lt.s32.totalorder %s24, 0
        %s248 = scalar_select %p247, %s24, 0
        %s249 = scalar_lea.vmem %s2, %s248
        %p250 = pneg %p104
        %p251 = pneg %p101
        %s252 = smul.u32 16, %s24
        %p253 = scmp.lt.s32.totalorder %s252, 15
        %s254 = scalar_select %p253, %s252, 15
        %s255 = smul.addr %s254, 8
        %s256 = scalar_lea.vmem %s3, %s255
        %p257 = pneg %p130
        %p258 = pneg %p127
        %p259 = pneg %p151
        %p260 = pneg %p148
        %p261 = pneg %p177
        %p262 = pneg %p174
        %s263 = sand.u32 %s164, 1
        %s264 = scalar_lea.sflag [#allocation3], %s263
        %s265 = sand.u32 %s164, 1
        %s266 = smul.addr %s265, 8
        %s267 = scalar_lea.vmem [#allocation2], %s266
        %p268 = scmp.lt.s32.totalorder %s23, 1
        %s269 = scalar_select %p268, %s23, 1
        %s270 = smul.addr %s269, 8
        %s271 = scalar_lea.vmem %s0, %s270
        %p272 = scmp.lt.s32.totalorder %s24, 0
        %s273 = scalar_select %p272, %s24, 0
        %s274 = smul.addr %s273, 8
        %s275 = scalar_lea.vmem %s1, %s274
        %p276 = scmp.lt.s32.totalorder %s24, 0
        %s277 = scalar_select %p276, %s24, 0
        %s278 = scalar_lea.vmem %s2, %s277
        %s279 = smul.u32 16, %s24
        %p280 = scmp.lt.s32.totalorder %s279, 15
        %s281 = scalar_select %p280, %s279, 15
        %s282 = smul.addr %s281, 8
        %s283 = scalar_lea.vmem %s3, %s282
        %s284 = smul.u32 16, %s24
        %p285 = scmp.eq.s32.totalorder %s24, 0
        // Predicated region
        $region41: #{feedforward_pallas.1} parent=39 // pred_check
          %p286 = pneg %p285
        $region42: #{feedforward_pallas.1} parent=39 // pred_check_branch
          %288 = sbr.rel (%p286) target = $region44
        $region43: #{feedforward_pallas.1} parent=39 // pred_region
          %v289 = vld [vmem:[%s4] sm:$0x1]
          %v291 = vperm.slane %v289, 0
          %vm293 = vcmask 261120
          %294 = vst.msk [vmem:[%s267] sm:$0xff] %vm293, %v291
        $region44: #{feedforward_pallas.1} parent=39 // pred_fallthru
          _
        %v295 = vld [vmem:[%s267] sm:$0xff]
        %v296 = vld [vmem:[%s271] sm:$0xff]
        %v297 = vld [vmem:[%s275] sm:$0xff]
        %v298 = vld [vmem:[%s275 + $0x8] sm:$0xff]
        %v299 = vld [vmem:[%s275 + $0x10] sm:$0xff]
        %v300 = vld [vmem:[%s275 + $0x18] sm:$0xff]
        %v301 = vld [vmem:[%s278] sm:$0x1]
        %v303 = vperm.slane %v301, 0
        %vm305 = vcmask 261120
        %v307 = vsel %vm305, %v296, 0
        %309 = vmatpush.msra.mxu0 0.0
        %310 = vmatpush.msra.mxu0 0.0
        %311 = vmatpush.msra.mxu0 0.0
        %312 = vmatpush.msra.mxu0 0.0
        %313 = vmatpush.msra.mxu0 0.0
        %314 = vmatpush.msra.mxu0 0.0
        %315 = vmatpush.msra.mxu0 0.0
        %316 = vmatpush.msra.mxu0 0.0
        %317 = vmatpush.msra.mxu0 0.0
        %318 = vmatpush.msra.mxu0 0.0
        %319 = vmatpush.msra.mxu0 0.0
        %320 = vmatpush.msra.mxu0 0.0
        %321 = vmatpush.msra.mxu0 %v300
        %322 = vmatpush.msra.mxu0 %v299
        %323 = vmatpush.msra.mxu0 %v298
        %324 = vmatpush.msra.mxu0 %v297
        %325 = vmatmul.f32.gmra.mxu0 %v307
        %v326 = vpop.f32.mrf.mxu0
        %v327 = vadd.f32 %v303, %v326
        %328 = vdwg.mxu0
        %v329 = vmul.f32 %v327, 0.5
        %v330 = vmul.f32 %v327, %v327
        %v331 = vmul.f32 %v330, 0.044715
        %v332 = vadd.f32 %v331, 1.0
        %v333 = vmul.f32 %v327, %v332
        %v334 = vmul.f32 %v333, 0.7978846
        %v335 = vtanh.pop %v334
        %v336 = vadd.f32 %v335, 1.0
        %v337 = vmul.f32 %v329, %v336
        %v338 = vld [vmem:[%s283] sm:$0xff]
        %v339 = vld [vmem:[%s283 + $0x8] sm:$0xff]
        %v340 = vld [vmem:[%s283 + $0x10] sm:$0xff]
        %v341 = vld [vmem:[%s283 + $0x18] sm:$0xff]
        %v342 = vld [vmem:[%s283 + $0x20] sm:$0xff]
        %v343 = vld [vmem:[%s283 + $0x28] sm:$0xff]
        %v344 = vld [vmem:[%s283 + $0x30] sm:$0xff]
        %v345 = vld [vmem:[%s283 + $0x38] sm:$0xff]
        %v346 = vld [vmem:[%s283 + $0x40] sm:$0xff]
        %v347 = vld [vmem:[%s283 + $0x48] sm:$0xff]
        %v348 = vld [vmem:[%s283 + $0x50] sm:$0xff]
        %v349 = vld [vmem:[%s283 + $0x58] sm:$0xff]
        %v350 = vld [vmem:[%s283 + $0x60] sm:$0xff]
        %v351 = vld [vmem:[%s283 + $0x68] sm:$0xff]
        %v352 = vld [vmem:[%s283 + $0x70] sm:$0xff]
        %v353 = vld [vmem:[%s283 + $0x78] sm:$0xff]
        %354 = vmatpush.msra.mxu0 %v353
        %355 = vmatpush.msra.mxu0 %v352
        %356 = vmatpush.msra.mxu0 %v351
        %357 = vmatpush.msra.mxu0 %v350
        %358 = vmatpush.msra.mxu0 %v349
        %359 = vmatpush.msra.mxu0 %v348
        %360 = vmatpush.msra.mxu0 %v347
        %361 = vmatpush.msra.mxu0 %v346
        %362 = vmatpush.msra.mxu0 %v345
        %363 = vmatpush.msra.mxu0 %v344
        %364 = vmatpush.msra.mxu0 %v343
        %365 = vmatpush.msra.mxu0 %v342
        %366 = vmatpush.msra.mxu0 %v341
        %367 = vmatpush.msra.mxu0 %v340
        %368 = vmatpush.msra.mxu0 %v339
        %369 = vmatpush.msra.mxu0 %v338
        %370 = vmatmul.f32.gmra.mxu0 %v337
        %v371 = vpop.f32.mrf.mxu0
        %v372 = vadd.f32 0.0, %v371
        %373 = vdwg.mxu0
        %v374 = vadd.f32 %v295, %v372
        %375 = vst.msk [vmem:[%s267] sm:$0xff] %vm305, %v374
        %s376 = sand.u32 %s164, 1
        %s377 = scalar_lea.sflag [#allocation3], %s376
        %s378 = sand.u32 %s164, 1
        %s379 = smul.addr %s378, 8
        %s380 = scalar_lea.vmem [#allocation2], %s379
        // Predicated region
        $region45: #{feedforward_pallas.1} parent=39 // pred_check
          %p381 = pneg %p174
        $region46: #{feedforward_pallas.1} parent=39 // pred_check_branch
          %383 = sbr.rel (%p381) target = $region48
        $region47: #{feedforward_pallas.1} parent=39 // pred_region
          %385 = vsyncadd %s377, 0
          %s386 = smul.addr %s23, 8
          %s387 = scalar_lea.hbm %s5, %s386
          %s389 = sshll.u32 %s380, 4
          %s390 = int_to_ptr.vmem [resolvable:$true] %s389
          %s391 = sshll.u32 %s387, 4
          %s392 = int_to_ptr.hbm [resolvable:$true] %s391
          %394 = dma.vmem_to_hbm [thread:$0]  %s390, 128, %s392, %s377
        $region48: #{feedforward_pallas.1} parent=39 // pred_fallthru
          _
      $region40: #{feedforward_pallas.1} parent=5 // pred_fallthru
        _
      %p395 = scmp.le.s32.totalorder 2, %s14
      // Predicated region
      $region49: #{feedforward_pallas.1} parent=5 // pred_check
        %p396 = pneg %p395
      $region50: #{feedforward_pallas.1} parent=5 // pred_check_branch
        %398 = sbr.rel (%p396) target = $region52
      $region51: #{feedforward_pallas.1} parent=5 // pred_region
        %s399 = ssub.s32 %s14, 2
        // Predicated region
        $region53: #{feedforward_pallas.1} parent=51 // pred_check
          %p400 = pneg %p180
        $region54: #{feedforward_pallas.1} parent=51 // pred_check_branch
          %402 = sbr.rel (%p400) target = $region56
        $region55: #{feedforward_pallas.1} parent=51 // pred_region
          %s403 = sand.u32 %s165, 1
          %s404 = scalar_lea.sflag [#allocation3], %s403
          %s405 = sand.u32 %s165, 1
          %s406 = smul.addr %s405, 8
          %s407 = scalar_lea.vmem [#allocation2], %s406
          %409 = dma.done %s404, 128
        $region56: #{feedforward_pallas.1} parent=51 // pred_fallthru
          _
      $region52: #{feedforward_pallas.1} parent=5 // pred_fallthru
        _
    $region6: #{feedforward_pallas.1} parent=1 // loop_footer
      %s18 = sadd.s32 1, %s14
    $region7: #{feedforward_pallas.1} parent=1 // loop_footer_branch
      %13 = sbr.rel target = $region3
    $region8: #{feedforward_pallas.1} parent=1 // loop_exit
      _
    %410 = vsyncpa [#allocation3], 1
    %s411 = scalar_lea.sflag [#allocation3], 1
    %412 = vsyncpa %s411, 1

</llo_original>
